<compile_context>
chip_gen: v6e
topology: v6e:2x2x1
jax: 0.10.0
libtpu: 0.0.40
codegen_flags: <defaults>
</compile_context>

<pallas_src>
import functools

import numpy as np
import jax
import jax.numpy as jnp
from jax import lax
from jax.experimental import pallas as pl
from jax.experimental.pallas import tpu as pltpu


def _yolo_loss_kernel(pred_ref, target_ref, out_ref, *, S, B, C,
                      i_coord, i_noobj, n_chunks):
    # pred_ref/target_ref: (5*B + C, rows_tile, 128) f32 VMEM tiles.
    # out_ref: (1, 8, 128) per-core partial-sum accumulator, resident across
    # the inner ("arbitrary") grid axis (same block index for every step).
    @pl.when(pl.program_id(1) == 0)
    def _():
        out_ref[...] = jnp.zeros_like(out_ref)

    inv_S = 1.0 / float(S)
    eps = 1e-9  # padded cells have 0-area boxes; keeps IoU finite (0/eps = 0)

    def chunk_loss(ci, acc):
        r0 = pl.multiple_of(ci * 8, 8)

        def pf(k):                       # one (8, 128) plane of the pred tile
            return pred_ref[k, pl.ds(r0, 8), :]

        def tf(k):                       # one (8, 128) plane of the target tile
            return target_ref[k, pl.ds(r0, 8), :]

        tconf0 = tf(4)                   # confidence of the first target box
        obj = tconf0 > 0.0               # lambda_i^obj
        noobj = tconf0 == 0.0            # lambda_ij^noobj

        # ---- no-object confidence loss (per-cell sum, masked) --------------
        noobj_sq = jnp.zeros_like(tconf0)
        for b in range(B):
            d = pf(5 * b + 4) - tf(5 * b + 4)
            noobj_sq = noobj_sq + d * d

        # ---- class loss over object cells (masked together with coord) -----
        cls_sq = jnp.zeros_like(tconf0)
        for c in range(C):
            d = pf(5 * B + c) - tf(5 * B + c)
            cls_sq = cls_sq + d * d

        # ---- target box (first box of each cell), denormalized to xyxy -----
        t_x, t_y, t_w, t_h = tf(0), tf(1), tf(2), tf(3)
        t_cx, t_cy = t_x * inv_S, t_y * inv_S
        t_x1 = t_cx - 0.5 * t_w
        t_y1 = t_cy - 0.5 * t_h
        t_x2 = t_cx + 0.5 * t_w
        t_y2 = t_cy + 0.5 * t_h
        t_area = t_w * t_h               # == (t_x2-t_x1)*(t_y2-t_y1)

        def pred_box(b):
            px, py = pf(5 * b + 0), pf(5 * b + 1)
            pw, ph = pf(5 * b + 2), pf(5 * b + 3)
            pc = pf(5 * b + 4)
            p_cx, p_cy = px * inv_S, py * inv_S
            p_x1 = p_cx - 0.5 * pw
            p_y1 = p_cy - 0.5 * ph
            p_x2 = p_cx + 0.5 * pw
            p_y2 = p_cy + 0.5 * ph
            iw = jnp.maximum(jnp.minimum(p_x2, t_x2) - jnp.maximum(p_x1, t_x1), 0.0)
            ih = jnp.maximum(jnp.minimum(p_y2, t_y2) - jnp.maximum(p_y1, t_y1), 0.0)
            inter = iw * ih
            p_area = pw * ph             # == (p_x2-p_x1)*(p_y2-p_y1)
            iou = inter * pl.reciprocal(p_area + t_area - inter + eps, approx=True)
            return px, py, pw, ph, pc, iou

        # ---- responsible-box selection fused with the IoU sweep ------------
        s_px, s_py, s_pw, s_ph, s_pc, best_iou = pred_box(0)
        s_tx, s_ty, s_tw, s_th = t_x, t_y, t_w, t_h
        for b in range(1, B):
            px, py, pw, ph, pc, iou = pred_box(b)
            better = iou > best_iou      # strict >: first max wins ties
            best_iou = jnp.where(better, iou, best_iou)
            s_px = jnp.where(better, px, s_px)
            s_py = jnp.where(better, py, s_py)
            s_pw = jnp.where(better, pw, s_pw)
            s_ph = jnp.where(better, ph, s_ph)
            s_pc = jnp.where(better, pc, s_pc)
            s_tx = jnp.where(better, tf(5 * b + 0), s_tx)
            s_ty = jnp.where(better, tf(5 * b + 1), s_ty)
            s_tw = jnp.where(better, tf(5 * b + 2), s_tw)
            s_th = jnp.where(better, tf(5 * b + 3), s_th)

        # NOTE: sqrt() yields NaN for negative predicted w/h in *object* cells,
        # matching the PyTorch reference (assumes activations keep w, h >= 0).
        xy_loss = (s_px - s_tx) ** 2 + (s_py - s_ty) ** 2
        wh_loss = ((jnp.sqrt(s_pw) - jnp.sqrt(s_tw)) ** 2 +
                   (jnp.sqrt(s_ph) - jnp.sqrt(s_th)) ** 2)
        obj_loss = (s_pc - best_iou) ** 2

        obj_terms = i_coord * (xy_loss + wh_loss) + obj_loss + cls_sq
        total = (jnp.where(obj, obj_terms, 0.0)
                 + jnp.where(noobj, i_noobj * noobj_sq, 0.0))
        return acc + total

    acc = lax.fori_loop(0, n_chunks, chunk_loss,
                        jnp.zeros((8, 128), jnp.float32), unroll=True)
    out_ref[...] += acc[None, :, :]


def yolov1_loss_v2(pred, target, *, num_grids, num_bboxes, num_classes,
                   i_coord, i_noobj, rows_tile=64, num_parallel=2):
    """Total YOLOv1 loss, semantics matching YOLOV1LossV2.forward."""
    S, B, C = num_grids, num_bboxes, num_classes
    N = 5 * B + C
    batch = pred.shape[0]
    assert pred.shape == (batch, S, S, N) and target.shape == pred.shape

    LANES = 128
    M = batch * S * S
    # Effective rows-per-block: do not over-pad tiny inputs, keep blocks a
    # multiple of 8 rows, and give every (core, step) a full block.
    rows_min = pl.cdiv(M, LANES)
    rows_per_core = max(8, pl.cdiv(pl.cdiv(rows_min, num_parallel), 8) * 8)
    rt = max(8, (min(rows_tile, rows_per_core) // 8) * 8)
    inner_steps = pl.cdiv(rows_per_core, rt)
    rows_per_core = inner_steps * rt
    R = rows_per_core * num_parallel
    M_pad = R * LANES

    def to_slab(x):
        # (batch, S, S, N) -> feature-major (N, R, 128) in one pad+reshape+
        # transpose expression (XLA fuses this into a single relayout pass).
        # Zero padding is loss-neutral: padded cells are no-object cells with
        # pred == target, so every term they touch is masked or zero.
        x = x.reshape(M, N).astype(jnp.float32)
        x = jnp.pad(x, ((0, M_pad - M), (0, 0)))
        return jnp.transpose(x.reshape(R, LANES, N), (2, 0, 1))

    p_slab = to_slab(pred)
    t_slab = to_slab(target)

    kernel = functools.partial(
        _yolo_loss_kernel, S=S, B=B, C=C,
        i_coord=float(i_coord), i_noobj=float(i_noobj), n_chunks=rt // 8)

    in_spec = pl.BlockSpec((N, rt, LANES),
                           lambda c, i: (0, c * inner_steps + i, 0))

    out = pl.pallas_call(
        kernel,
        out_shape=jax.ShapeDtypeStruct((num_parallel, 8, LANES), jnp.float32),
        grid_spec=pltpu.PrefetchScalarGridSpec(
            num_scalar_prefetch=0,
            grid=(num_parallel, inner_steps),
            in_specs=[in_spec, in_spec],
            out_specs=pl.BlockSpec((1, 8, LANES), lambda c, i: (c, 0, 0)),
        ),
        compiler_params=pltpu.CompilerParams(
            dimension_semantics=("parallel", "arbitrary"),
            vmem_limit_bytes=32 * 1024 * 1024),
    )(p_slab, t_slab)
    return jnp.sum(out) / float(batch)


def _reference_loss(pred, target, S, B, C, i_coord, i_noobj):
    """NumPy re-implementation that mirrors the PyTorch code path exactly."""
    pred = np.asarray(pred, np.float32)
    target = np.asarray(target, np.float32)
    bs = pred.shape[0]
    N = 5 * B + C
    predf = pred.reshape(-1, N)
    targf = target.reshape(-1, N)
    obj = targf[:, 4] > 0
    noobj = targf[:, 4] == 0
    coord_pred = predf[obj]
    coord_target = targf[obj]
    bbox_pred = coord_pred[:, :5 * B].reshape(-1, 5)
    bbox_target = coord_target[:, :5 * B].reshape(-1, 5)

    def denorm(xywh):
        out = np.zeros((xywh.shape[0], 4), np.float32)
        out[:, 0:2] = xywh[:, 0:2] / float(S) - 0.5 * xywh[:, 2:4]
        out[:, 2:4] = xywh[:, 0:2] / float(S) + 0.5 * xywh[:, 2:4]
        return out

    def iou_np(b1, b2):
        lt = np.maximum(b1[:, None, :2], b2[None, :, :2])
        rb = np.minimum(b1[:, None, 2:], b2[None, :, 2:])
        wh = np.clip(rb - lt, 0.0, None)
        inter = wh[..., 0] * wh[..., 1]
        a1 = ((b1[:, 2] - b1[:, 0]) * (b1[:, 3] - b1[:, 1]))[:, None]
        a2 = ((b2[:, 2] - b2[:, 0]) * (b2[:, 3] - b2[:, 1]))[None, :]
        return inter / (a1 + a2 - inter)

    n_boxes = bbox_target.shape[0]
    resp_mask = np.zeros(n_boxes, bool)
    target_iou = np.zeros((n_boxes, 5), np.float32)
    for i in range(0, n_boxes, B):
        p_xyxy = denorm(bbox_pred[i:i + B])
        t_xyxy = denorm(bbox_target[i:i + 1])
        iou = iou_np(p_xyxy, t_xyxy)          # (B, 1)
        mi = int(np.argmax(iou[:, 0]))
        resp_mask[i + mi] = True
        target_iou[i + mi, 4] = iou[mi, 0]

    bp = bbox_pred[resp_mask]
    bt = bbox_target[resp_mask]
    ti = target_iou[resp_mask]
    loss_wh = np.sum((np.sqrt(bp[:, 2:4]) - np.sqrt(bt[:, 2:4])) ** 2)
    loss_xy = np.sum((bp[:, :2] - bt[:, :2]) ** 2)
    loss_obj = np.sum((bp[:, 4] - ti[:, 4]) ** 2)
    conf_idx = [4 + 5 * b for b in range(B)]
    loss_noobj = np.sum((predf[noobj][:, conf_idx] - targf[noobj][:, conf_idx]) ** 2)
    loss_class = np.sum((coord_pred[:, 5 * B:] - coord_target[:, 5 * B:]) ** 2)
    total = (i_coord * (loss_xy + loss_wh) + loss_obj
             + i_noobj * loss_noobj + loss_class)
    return total / float(bs)


if __name__ == "__main__":
    # YOLOv1-style but small: S=7, B=2, C=20 -> N = 30, batch = 2
    S, B, C = 7, 2, 20
    N = 5 * B + C
    batch = 2
    i_coord, i_noobj = 5.0, 0.5

    key = jax.random.PRNGKey(0)
    k1, k2, k3 = jax.random.split(key, 3)
    pred = jax.random.uniform(k1, (batch, S, S, N), jnp.float32, 0.05, 0.95)
    target = jax.random.uniform(k2, (batch, S, S, N), jnp.float32, 0.05, 0.95)
    obj_cells = jax.random.uniform(k3, (batch, S, S)) < 0.3
    for b in range(B):
        target = target.at[..., 4 + 5 * b].set(jnp.where(obj_cells, 1.0, 0.0))

    loss = yolov1_loss_v2(pred, target, num_grids=S, num_bboxes=B,
                          num_classes=C, i_coord=i_coord, i_noobj=i_noobj)
    loss = jax.block_until_ready(loss)

    ref = _reference_loss(np.asarray(pred), np.asarray(target),
                          S, B, C, i_coord, i_noobj)
    assert np.isfinite(float(loss))
    np.testing.assert_allclose(float(loss), ref, rtol=1e-4, atol=1e-3)
    print("KERNEL_OK")
</pallas_src>

<mosaic_0001>
module attributes {stable_mosaic.version = 11 : i64} {
  func.func @_yolo_loss_kernel(%arg0: i32, %arg1: i32, %arg2: memref<30x8x128xf32, #tpu.memory_space<vmem>>, %arg3: memref<30x8x128xf32, #tpu.memory_space<vmem>>, %arg4: memref<1x8x128xf32, #tpu.memory_space<vmem>>) attributes {dimension_semantics = [#tpu.dimension_semantics<parallel>, #tpu.dimension_semantics<arbitrary>], iteration_bounds = array<i64: 2, 1>, scalar_prefetch = 0 : i64, scratch_operands = 0 : i64, tpu.core_type = #tpu.core_type<tc>, window_params = [{transform_indices = @transform_0, window_bounds = array<i64: 30, 8, 128>}, {transform_indices = @transform_1, window_bounds = array<i64: 30, 8, 128>}, {transform_indices = @transform_2, window_bounds = array<i64: 1, 8, 128>}]} {
    %c0_i32 = arith.constant 0 : i32
    %0 = arith.cmpi eq, %arg1, %c0_i32 : i32
    %1 = arith.extui %0 : i1 to i32
    %c0_i32_0 = arith.constant 0 : i32
    %2 = arith.cmpi ne, %1, %c0_i32_0 : i32
    scf.if %2 {
      %cst_136 = arith.constant 0.000000e+00 : f32
      %396 = vector.broadcast %cst_136 : f32 to vector<1x8x128xf32>
      %c0_137 = arith.constant 0 : index
      %c0_138 = arith.constant 0 : index
      %c0_139 = arith.constant 0 : index
      %397 = vector.load %arg4[%c0_137, %c0_138, %c0_139] : memref<1x8x128xf32, #tpu.memory_space<vmem>>, vector<1x8x128xf32>
      tpu.vector_store %arg4[%c0_137, %c0_138, %c0_139], %396 {strides = array<i32>} : memref<1x8x128xf32, #tpu.memory_space<vmem>>, vector<1x8x128xf32>,
    } else {
    }
    %cst = arith.constant 0.000000e+00 : f32
    %3 = vector.broadcast %cst : f32 to vector<8x128xf32>
    %c0_i32_1 = arith.constant 0 : i32
    %c8_i32 = arith.constant 8 : i32
    %4 = arith.muli %c0_i32_1, %c8_i32 : i32
    %5 = tpu.assume_multiple %4, 8 : i32
    %c4 = arith.constant 4 : index
    %6 = arith.index_cast %5 : i32 to index
    %c0 = arith.constant 0 : index
    %7 = vector.load %arg3[%c4, %6, %c0] : memref<30x8x128xf32, #tpu.memory_space<vmem>>, vector<1x8x128xf32>
    %8 = vector.shape_cast %7 : vector<1x8x128xf32> to vector<8x128xf32>
    %cst_2 = arith.constant 0.000000e+00 : f32
    %9 = vector.broadcast %cst_2 : f32 to vector<8x128xf32>
    %10 = arith.cmpf ogt, %8, %9 : vector<8x128xf32>
    %cst_3 = arith.constant 0.000000e+00 : f32
    %11 = vector.broadcast %cst_3 : f32 to vector<8x128xf32>
    %12 = arith.cmpf oeq, %8, %11 : vector<8x128xf32>
    %cst_4 = arith.constant 0.000000e+00 : f32
    %13 = vector.broadcast %cst_4 : f32 to vector<8x128xf32>
    %c4_5 = arith.constant 4 : index
    %14 = arith.index_cast %5 : i32 to index
    %c0_6 = arith.constant 0 : index
    %15 = vector.load %arg2[%c4_5, %14, %c0_6] : memref<30x8x128xf32, #tpu.memory_space<vmem>>, vector<1x8x128xf32>
    %16 = vector.shape_cast %15 : vector<1x8x128xf32> to vector<8x128xf32>
    %c4_7 = arith.constant 4 : index
    %17 = arith.index_cast %5 : i32 to index
    %c0_8 = arith.constant 0 : index
    %18 = vector.load %arg3[%c4_7, %17, %c0_8] : memref<30x8x128xf32, #tpu.memory_space<vmem>>, vector<1x8x128xf32>
    %19 = vector.shape_cast %18 : vector<1x8x128xf32> to vector<8x128xf32>
    %20 = arith.subf %16, %19 : vector<8x128xf32>
    %21 = arith.mulf %20, %20 : vector<8x128xf32>
    %22 = arith.addf %13, %21 : vector<8x128xf32>
    %c9 = arith.constant 9 : index
    %23 = arith.index_cast %5 : i32 to index
    %c0_9 = arith.constant 0 : index
    %24 = vector.load %arg2[%c9, %23, %c0_9] : memref<30x8x128xf32, #tpu.memory_space<vmem>>, vector<1x8x128xf32>
    %25 = vector.shape_cast %24 : vector<1x8x128xf32> to vector<8x128xf32>
    %c9_10 = arith.constant 9 : index
    %26 = arith.index_cast %5 : i32 to index
    %c0_11 = arith.constant 0 : index
    %27 = vector.load %arg3[%c9_10, %26, %c0_11] : memref<30x8x128xf32, #tpu.memory_space<vmem>>, vector<1x8x128xf32>
    %28 = vector.shape_cast %27 : vector<1x8x128xf32> to vector<8x128xf32>
    %29 = arith.subf %25, %28 : vector<8x128xf32>
    %30 = arith.mulf %29, %29 : vector<8x128xf32>
    %31 = arith.addf %22, %30 : vector<8x128xf32>
    %cst_12 = arith.constant 0.000000e+00 : f32
    %32 = vector.broadcast %cst_12 : f32 to vector<8x128xf32>
    %c10 = arith.constant 10 : index
    %33 = arith.index_cast %5 : i32 to index
    %c0_13 = arith.constant 0 : index
    %34 = vector.load %arg2[%c10, %33, %c0_13] : memref<30x8x128xf32, #tpu.memory_space<vmem>>, vector<1x8x128xf32>
    %35 = vector.shape_cast %34 : vector<1x8x128xf32> to vector<8x128xf32>
    %c10_14 = arith.constant 10 : index
    %36 = arith.index_cast %5 : i32 to index
    %c0_15 = arith.constant 0 : index
    %37 = vector.load %arg3[%c10_14, %36, %c0_15] : memref<30x8x128xf32, #tpu.memory_space<vmem>>, vector<1x8x128xf32>
    %38 = vector.shape_cast %37 : vector<1x8x128xf32> to vector<8x128xf32>
    %39 = arith.subf %35, %38 : vector<8x128xf32>
    %40 = arith.mulf %39, %39 : vector<8x128xf32>
    %41 = arith.addf %32, %40 : vector<8x128xf32>
    %c11 = arith.constant 11 : index
    %42 = arith.index_cast %5 : i32 to index
    %c0_16 = arith.constant 0 : index
    %43 = vector.load %arg2[%c11, %42, %c0_16] : memref<30x8x128xf32, #tpu.memory_space<vmem>>, vector<1x8x128xf32>
    %44 = vector.shape_cast %43 : vector<1x8x128xf32> to vector<8x128xf32>
    %c11_17 = arith.constant 11 : index
    %45 = arith.index_cast %5 : i32 to index
    %c0_18 = arith.constant 0 : index
    %46 = vector.load %arg3[%c11_17, %45, %c0_18] : memref<30x8x128xf32, #tpu.memory_space<vmem>>, vector<1x8x128xf32>
    %47 = vector.shape_cast %46 : vector<1x8x128xf32> to vector<8x128xf32>
    %48 = arith.subf %44, %47 : vector<8x128xf32>
    %49 = arith.mulf %48, %48 : vector<8x128xf32>
    %50 = arith.addf %41, %49 : vector<8x128xf32>
    %c12 = arith.constant 12 : index
    %51 = arith.index_cast %5 : i32 to index
    %c0_19 = arith.constant 0 : index
    %52 = vector.load %arg2[%c12, %51, %c0_19] : memref<30x8x128xf32, #tpu.memory_space<vmem>>, vector<1x8x128xf32>
    %53 = vector.shape_cast %52 : vector<1x8x128xf32> to vector<8x128xf32>
    %c12_20 = arith.constant 12 : index
    %54 = arith.index_cast %5 : i32 to index
    %c0_21 = arith.constant 0 : index
    %55 = vector.load %arg3[%c12_20, %54, %c0_21] : memref<30x8x128xf32, #tpu.memory_space<vmem>>, vector<1x8x128xf32>
    %56 = vector.shape_cast %55 : vector<1x8x128xf32> to vector<8x128xf32>
    %57 = arith.subf %53, %56 : vector<8x128xf32>
    %58 = arith.mulf %57, %57 : vector<8x128xf32>
    %59 = arith.addf %50, %58 : vector<8x128xf32>
    %c13 = arith.constant 13 : index
    %60 = arith.index_cast %5 : i32 to index
    %c0_22 = arith.constant 0 : index
    %61 = vector.load %arg2[%c13, %60, %c0_22] : memref<30x8x128xf32, #tpu.memory_space<vmem>>, vector<1x8x128xf32>
    %62 = vector.shape_cast %61 : vector<1x8x128xf32> to vector<8x128xf32>
    %c13_23 = arith.constant 13 : index
    %63 = arith.index_cast %5 : i32 to index
    %c0_24 = arith.constant 0 : index
    %64 = vector.load %arg3[%c13_23, %63, %c0_24] : memref<30x8x128xf32, #tpu.memory_space<vmem>>, vector<1x8x128xf32>
    %65 = vector.shape_cast %64 : vector<1x8x128xf32> to vector<8x128xf32>
    %66 = arith.subf %62, %65 : vector<8x128xf32>
    %67 = arith.mulf %66, %66 : vector<8x128xf32>
    %68 = arith.addf %59, %67 : vector<8x128xf32>
    %c14 = arith.constant 14 : index
    %69 = arith.index_cast %5 : i32 to index
    %c0_25 = arith.constant 0 : index
    %70 = vector.load %arg2[%c14, %69, %c0_25] : memref<30x8x128xf32, #tpu.memory_space<vmem>>, vector<1x8x128xf32>
    %71 = vector.shape_cast %70 : vector<1x8x128xf32> to vector<8x128xf32>
    %c14_26 = arith.constant 14 : index
    %72 = arith.index_cast %5 : i32 to index
    %c0_27 = arith.constant 0 : index
    %73 = vector.load %arg3[%c14_26, %72, %c0_27] : memref<30x8x128xf32, #tpu.memory_space<vmem>>, vector<1x8x128xf32>
    %74 = vector.shape_cast %73 : vector<1x8x128xf32> to vector<8x128xf32>
    %75 = arith.subf %71, %74 : vector<8x128xf32>
    %76 = arith.mulf %75, %75 : vector<8x128xf32>
    %77 = arith.addf %68, %76 : vector<8x128xf32>
    %c15 = arith.constant 15 : index
    %78 = arith.index_cast %5 : i32 to index
    %c0_28 = arith.constant 0 : index
    %79 = vector.load %arg2[%c15, %78, %c0_28] : memref<30x8x128xf32, #tpu.memory_space<vmem>>, vector<1x8x128xf32>
    %80 = vector.shape_cast %79 : vector<1x8x128xf32> to vector<8x128xf32>
    %c15_29 = arith.constant 15 : index
    %81 = arith.index_cast %5 : i32 to index
    %c0_30 = arith.constant 0 : index
    %82 = vector.load %arg3[%c15_29, %81, %c0_30] : memref<30x8x128xf32, #tpu.memory_space<vmem>>, vector<1x8x128xf32>
    %83 = vector.shape_cast %82 : vector<1x8x128xf32> to vector<8x128xf32>
    %84 = arith.subf %80, %83 : vector<8x128xf32>
    %85 = arith.mulf %84, %84 : vector<8x128xf32>
    %86 = arith.addf %77, %85 : vector<8x128xf32>
    %c16 = arith.constant 16 : index
    %87 = arith.index_cast %5 : i32 to index
    %c0_31 = arith.constant 0 : index
    %88 = vector.load %arg2[%c16, %87, %c0_31] : memref<30x8x128xf32, #tpu.memory_space<vmem>>, vector<1x8x128xf32>
    %89 = vector.shape_cast %88 : vector<1x8x128xf32> to vector<8x128xf32>
    %c16_32 = arith.constant 16 : index
    %90 = arith.index_cast %5 : i32 to index
    %c0_33 = arith.constant 0 : index
    %91 = vector.load %arg3[%c16_32, %90, %c0_33] : memref<30x8x128xf32, #tpu.memory_space<vmem>>, vector<1x8x128xf32>
    %92 = vector.shape_cast %91 : vector<1x8x128xf32> to vector<8x128xf32>
    %93 = arith.subf %89, %92 : vector<8x128xf32>
    %94 = arith.mulf %93, %93 : vector<8x128xf32>
    %95 = arith.addf %86, %94 : vector<8x128xf32>
    %c17 = arith.constant 17 : index
    %96 = arith.index_cast %5 : i32 to index
    %c0_34 = arith.constant 0 : index
    %97 = vector.load %arg2[%c17, %96, %c0_34] : memref<30x8x128xf32, #tpu.memory_space<vmem>>, vector<1x8x128xf32>
    %98 = vector.shape_cast %97 : vector<1x8x128xf32> to vector<8x128xf32>
    %c17_35 = arith.constant 17 : index
    %99 = arith.index_cast %5 : i32 to index
    %c0_36 = arith.constant 0 : index
    %100 = vector.load %arg3[%c17_35, %99, %c0_36] : memref<30x8x128xf32, #tpu.memory_space<vmem>>, vector<1x8x128xf32>
    %101 = vector.shape_cast %100 : vector<1x8x128xf32> to vector<8x128xf32>
    %102 = arith.subf %98, %101 : vector<8x128xf32>
    %103 = arith.mulf %102, %102 : vector<8x128xf32>
    %104 = arith.addf %95, %103 : vector<8x128xf32>
    %c18 = arith.constant 18 : index
    %105 = arith.index_cast %5 : i32 to index
    %c0_37 = arith.constant 0 : index
    %106 = vector.load %arg2[%c18, %105, %c0_37] : memref<30x8x128xf32, #tpu.memory_space<vmem>>, vector<1x8x128xf32>
    %107 = vector.shape_cast %106 : vector<1x8x128xf32> to vector<8x128xf32>
    %c18_38 = arith.constant 18 : index
    %108 = arith.index_cast %5 : i32 to index
    %c0_39 = arith.constant 0 : index
    %109 = vector.load %arg3[%c18_38, %108, %c0_39] : memref<30x8x128xf32, #tpu.memory_space<vmem>>, vector<1x8x128xf32>
    %110 = vector.shape_cast %109 : vector<1x8x128xf32> to vector<8x128xf32>
    %111 = arith.subf %107, %110 : vector<8x128xf32>
    %112 = arith.mulf %111, %111 : vector<8x128xf32>
    %113 = arith.addf %104, %112 : vector<8x128xf32>
    %c19 = arith.constant 19 : index
    %114 = arith.index_cast %5 : i32 to index
    %c0_40 = arith.constant 0 : index
    %115 = vector.load %arg2[%c19, %114, %c0_40] : memref<30x8x128xf32, #tpu.memory_space<vmem>>, vector<1x8x128xf32>
    %116 = vector.shape_cast %115 : vector<1x8x128xf32> to vector<8x128xf32>
    %c19_41 = arith.constant 19 : index
    %117 = arith.index_cast %5 : i32 to index
    %c0_42 = arith.constant 0 : index
    %118 = vector.load %arg3[%c19_41, %117, %c0_42] : memref<30x8x128xf32, #tpu.memory_space<vmem>>, vector<1x8x128xf32>
    %119 = vector.shape_cast %118 : vector<1x8x128xf32> to vector<8x128xf32>
    %120 = arith.subf %116, %119 : vector<8x128xf32>
    %121 = arith.mulf %120, %120 : vector<8x128xf32>
    %122 = arith.addf %113, %121 : vector<8x128xf32>
    %c20 = arith.constant 20 : index
    %123 = arith.index_cast %5 : i32 to index
    %c0_43 = arith.constant 0 : index
    %124 = vector.load %arg2[%c20, %123, %c0_43] : memref<30x8x128xf32, #tpu.memory_space<vmem>>, vector<1x8x128xf32>
    %125 = vector.shape_cast %124 : vector<1x8x128xf32> to vector<8x128xf32>
    %c20_44 = arith.constant 20 : index
    %126 = arith.index_cast %5 : i32 to index
    %c0_45 = arith.constant 0 : index
    %127 = vector.load %arg3[%c20_44, %126, %c0_45] : memref<30x8x128xf32, #tpu.memory_space<vmem>>, vector<1x8x128xf32>
    %128 = vector.shape_cast %127 : vector<1x8x128xf32> to vector<8x128xf32>
    %129 = arith.subf %125, %128 : vector<8x128xf32>
    %130 = arith.mulf %129, %129 : vector<8x128xf32>
    %131 = arith.addf %122, %130 : vector<8x128xf32>
    %c21 = arith.constant 21 : index
    %132 = arith.index_cast %5 : i32 to index
    %c0_46 = arith.constant 0 : index
    %133 = vector.load %arg2[%c21, %132, %c0_46] : memref<30x8x128xf32, #tpu.memory_space<vmem>>, vector<1x8x128xf32>
    %134 = vector.shape_cast %133 : vector<1x8x128xf32> to vector<8x128xf32>
    %c21_47 = arith.constant 21 : index
    %135 = arith.index_cast %5 : i32 to index
    %c0_48 = arith.constant 0 : index
    %136 = vector.load %arg3[%c21_47, %135, %c0_48] : memref<30x8x128xf32, #tpu.memory_space<vmem>>, vector<1x8x128xf32>
    %137 = vector.shape_cast %136 : vector<1x8x128xf32> to vector<8x128xf32>
    %138 = arith.subf %134, %137 : vector<8x128xf32>
    %139 = arith.mulf %138, %138 : vector<8x128xf32>
    %140 = arith.addf %131, %139 : vector<8x128xf32>
    %c22 = arith.constant 22 : index
    %141 = arith.index_cast %5 : i32 to index
    %c0_49 = arith.constant 0 : index
    %142 = vector.load %arg2[%c22, %141, %c0_49] : memref<30x8x128xf32, #tpu.memory_space<vmem>>, vector<1x8x128xf32>
    %143 = vector.shape_cast %142 : vector<1x8x128xf32> to vector<8x128xf32>
    %c22_50 = arith.constant 22 : index
    %144 = arith.index_cast %5 : i32 to index
    %c0_51 = arith.constant 0 : index
    %145 = vector.load %arg3[%c22_50, %144, %c0_51] : memref<30x8x128xf32, #tpu.memory_space<vmem>>, vector<1x8x128xf32>
    %146 = vector.shape_cast %145 : vector<1x8x128xf32> to vector<8x128xf32>
    %147 = arith.subf %143, %146 : vector<8x128xf32>
    %148 = arith.mulf %147, %147 : vector<8x128xf32>
    %149 = arith.addf %140, %148 : vector<8x128xf32>
    %c23 = arith.constant 23 : index
    %150 = arith.index_cast %5 : i32 to index
    %c0_52 = arith.constant 0 : index
    %151 = vector.load %arg2[%c23, %150, %c0_52] : memref<30x8x128xf32, #tpu.memory_space<vmem>>, vector<1x8x128xf32>
    %152 = vector.shape_cast %151 : vector<1x8x128xf32> to vector<8x128xf32>
    %c23_53 = arith.constant 23 : index
    %153 = arith.index_cast %5 : i32 to index
    %c0_54 = arith.constant 0 : index
    %154 = vector.load %arg3[%c23_53, %153, %c0_54] : memref<30x8x128xf32, #tpu.memory_space<vmem>>, vector<1x8x128xf32>
    %155 = vector.shape_cast %154 : vector<1x8x128xf32> to vector<8x128xf32>
    %156 = arith.subf %152, %155 : vector<8x128xf32>
    %157 = arith.mulf %156, %156 : vector<8x128xf32>
    %158 = arith.addf %149, %157 : vector<8x128xf32>
    %c24 = arith.constant 24 : index
    %159 = arith.index_cast %5 : i32 to index
    %c0_55 = arith.constant 0 : index
    %160 = vector.load %arg2[%c24, %159, %c0_55] : memref<30x8x128xf32, #tpu.memory_space<vmem>>, vector<1x8x128xf32>
    %161 = vector.shape_cast %160 : vector<1x8x128xf32> to vector<8x128xf32>
    %c24_56 = arith.constant 24 : index
    %162 = arith.index_cast %5 : i32 to index
    %c0_57 = arith.constant 0 : index
    %163 = vector.load %arg3[%c24_56, %162, %c0_57] : memref<30x8x128xf32, #tpu.memory_space<vmem>>, vector<1x8x128xf32>
    %164 = vector.shape_cast %163 : vector<1x8x128xf32> to vector<8x128xf32>
    %165 = arith.subf %161, %164 : vector<8x128xf32>
    %166 = arith.mulf %165, %165 : vector<8x128xf32>
    %167 = arith.addf %158, %166 : vector<8x128xf32>
    %c25 = arith.constant 25 : index
    %168 = arith.index_cast %5 : i32 to index
    %c0_58 = arith.constant 0 : index
    %169 = vector.load %arg2[%c25, %168, %c0_58] : memref<30x8x128xf32, #tpu.memory_space<vmem>>, vector<1x8x128xf32>
    %170 = vector.shape_cast %169 : vector<1x8x128xf32> to vector<8x128xf32>
    %c25_59 = arith.constant 25 : index
    %171 = arith.index_cast %5 : i32 to index
    %c0_60 = arith.constant 0 : index
    %172 = vector.load %arg3[%c25_59, %171, %c0_60] : memref<30x8x128xf32, #tpu.memory_space<vmem>>, vector<1x8x128xf32>
    %173 = vector.shape_cast %172 : vector<1x8x128xf32> to vector<8x128xf32>
    %174 = arith.subf %170, %173 : vector<8x128xf32>
    %175 = arith.mulf %174, %174 : vector<8x128xf32>
    %176 = arith.addf %167, %175 : vector<8x128xf32>
    %c26 = arith.constant 26 : index
    %177 = arith.index_cast %5 : i32 to index
    %c0_61 = arith.constant 0 : index
    %178 = vector.load %arg2[%c26, %177, %c0_61] : memref<30x8x128xf32, #tpu.memory_space<vmem>>, vector<1x8x128xf32>
    %179 = vector.shape_cast %178 : vector<1x8x128xf32> to vector<8x128xf32>
    %c26_62 = arith.constant 26 : index
    %180 = arith.index_cast %5 : i32 to index
    %c0_63 = arith.constant 0 : index
    %181 = vector.load %arg3[%c26_62, %180, %c0_63] : memref<30x8x128xf32, #tpu.memory_space<vmem>>, vector<1x8x128xf32>
    %182 = vector.shape_cast %181 : vector<1x8x128xf32> to vector<8x128xf32>
    %183 = arith.subf %179, %182 : vector<8x128xf32>
    %184 = arith.mulf %183, %183 : vector<8x128xf32>
    %185 = arith.addf %176, %184 : vector<8x128xf32>
    %c27 = arith.constant 27 : index
    %186 = arith.index_cast %5 : i32 to index
    %c0_64 = arith.constant 0 : index
    %187 = vector.load %arg2[%c27, %186, %c0_64] : memref<30x8x128xf32, #tpu.memory_space<vmem>>, vector<1x8x128xf32>
    %188 = vector.shape_cast %187 : vector<1x8x128xf32> to vector<8x128xf32>
    %c27_65 = arith.constant 27 : index
    %189 = arith.index_cast %5 : i32 to index
    %c0_66 = arith.constant 0 : index
    %190 = vector.load %arg3[%c27_65, %189, %c0_66] : memref<30x8x128xf32, #tpu.memory_space<vmem>>, vector<1x8x128xf32>
    %191 = vector.shape_cast %190 : vector<1x8x128xf32> to vector<8x128xf32>
    %192 = arith.subf %188, %191 : vector<8x128xf32>
    %193 = arith.mulf %192, %192 : vector<8x128xf32>
    %194 = arith.addf %185, %193 : vector<8x128xf32>
    %c28 = arith.constant 28 : index
    %195 = arith.index_cast %5 : i32 to index
    %c0_67 = arith.constant 0 : index
    %196 = vector.load %arg2[%c28, %195, %c0_67] : memref<30x8x128xf32, #tpu.memory_space<vmem>>, vector<1x8x128xf32>
    %197 = vector.shape_cast %196 : vector<1x8x128xf32> to vector<8x128xf32>
    %c28_68 = arith.constant 28 : index
    %198 = arith.index_cast %5 : i32 to index
    %c0_69 = arith.constant 0 : index
    %199 = vector.load %arg3[%c28_68, %198, %c0_69] : memref<30x8x128xf32, #tpu.memory_space<vmem>>, vector<1x8x128xf32>
    %200 = vector.shape_cast %199 : vector<1x8x128xf32> to vector<8x128xf32>
    %201 = arith.subf %197, %200 : vector<8x128xf32>
    %202 = arith.mulf %201, %201 : vector<8x128xf32>
    %203 = arith.addf %194, %202 : vector<8x128xf32>
    %c29 = arith.constant 29 : index
    %204 = arith.index_cast %5 : i32 to index
    %c0_70 = arith.constant 0 : index
    %205 = vector.load %arg2[%c29, %204, %c0_70] : memref<30x8x128xf32, #tpu.memory_space<vmem>>, vector<1x8x128xf32>
    %206 = vector.shape_cast %205 : vector<1x8x128xf32> to vector<8x128xf32>
    %c29_71 = arith.constant 29 : index
    %207 = arith.index_cast %5 : i32 to index
    %c0_72 = arith.constant 0 : index
    %208 = vector.load %arg3[%c29_71, %207, %c0_72] : memref<30x8x128xf32, #tpu.memory_space<vmem>>, vector<1x8x128xf32>
    %209 = vector.shape_cast %208 : vector<1x8x128xf32> to vector<8x128xf32>
    %210 = arith.subf %206, %209 : vector<8x128xf32>
    %211 = arith.mulf %210, %210 : vector<8x128xf32>
    %212 = arith.addf %203, %211 : vector<8x128xf32>
    %c0_73 = arith.constant 0 : index
    %213 = arith.index_cast %5 : i32 to index
    %c0_74 = arith.constant 0 : index
    %214 = vector.load %arg3[%c0_73, %213, %c0_74] : memref<30x8x128xf32, #tpu.memory_space<vmem>>, vector<1x8x128xf32>
    %215 = vector.shape_cast %214 : vector<1x8x128xf32> to vector<8x128xf32>
    %c1 = arith.constant 1 : index
    %216 = arith.index_cast %5 : i32 to index
    %c0_75 = arith.constant 0 : index
    %217 = vector.load %arg3[%c1, %216, %c0_75] : memref<30x8x128xf32, #tpu.memory_space<vmem>>, vector<1x8x128xf32>
    %218 = vector.shape_cast %217 : vector<1x8x128xf32> to vector<8x128xf32>
    %c2 = arith.constant 2 : index
    %219 = arith.index_cast %5 : i32 to index
    %c0_76 = arith.constant 0 : index
    %220 = vector.load %arg3[%c2, %219, %c0_76] : memref<30x8x128xf32, #tpu.memory_space<vmem>>, vector<1x8x128xf32>
    %221 = vector.shape_cast %220 : vector<1x8x128xf32> to vector<8x128xf32>
    %c3 = arith.constant 3 : index
    %222 = arith.index_cast %5 : i32 to index
    %c0_77 = arith.constant 0 : index
    %223 = vector.load %arg3[%c3, %222, %c0_77] : memref<30x8x128xf32, #tpu.memory_space<vmem>>, vector<1x8x128xf32>
    %224 = vector.shape_cast %223 : vector<1x8x128xf32> to vector<8x128xf32>
    %cst_78 = arith.constant 0.142857149 : f32
    %225 = vector.broadcast %cst_78 : f32 to vector<8x128xf32>
    %226 = arith.mulf %215, %225 : vector<8x128xf32>
    %cst_79 = arith.constant 0.142857149 : f32
    %227 = vector.broadcast %cst_79 : f32 to vector<8x128xf32>
    %228 = arith.mulf %218, %227 : vector<8x128xf32>
    %cst_80 = arith.constant 5.000000e-01 : f32
    %229 = vector.broadcast %cst_80 : f32 to vector<8x128xf32>
    %230 = arith.mulf %229, %221 : vector<8x128xf32>
    %231 = arith.subf %226, %230 : vector<8x128xf32>
    %cst_81 = arith.constant 5.000000e-01 : f32
    %232 = vector.broadcast %cst_81 : f32 to vector<8x128xf32>
    %233 = arith.mulf %232, %224 : vector<8x128xf32>
    %234 = arith.subf %228, %233 : vector<8x128xf32>
    %cst_82 = arith.constant 5.000000e-01 : f32
    %235 = vector.broadcast %cst_82 : f32 to vector<8x128xf32>
    %236 = arith.mulf %235, %221 : vector<8x128xf32>
    %237 = arith.addf %226, %236 : vector<8x128xf32>
    %cst_83 = arith.constant 5.000000e-01 : f32
    %238 = vector.broadcast %cst_83 : f32 to vector<8x128xf32>
    %239 = arith.mulf %238, %224 : vector<8x128xf32>
    %240 = arith.addf %228, %239 : vector<8x128xf32>
    %241 = arith.mulf %221, %224 : vector<8x128xf32>
    %c0_84 = arith.constant 0 : index
    %242 = arith.index_cast %5 : i32 to index
    %c0_85 = arith.constant 0 : index
    %243 = vector.load %arg2[%c0_84, %242, %c0_85] : memref<30x8x128xf32, #tpu.memory_space<vmem>>, vector<1x8x128xf32>
    %244 = vector.shape_cast %243 : vector<1x8x128xf32> to vector<8x128xf32>
    %c1_86 = arith.constant 1 : index
    %245 = arith.index_cast %5 : i32 to index
    %c0_87 = arith.constant 0 : index
    %246 = vector.load %arg2[%c1_86, %245, %c0_87] : memref<30x8x128xf32, #tpu.memory_space<vmem>>, vector<1x8x128xf32>
    %247 = vector.shape_cast %246 : vector<1x8x128xf32> to vector<8x128xf32>
    %c2_88 = arith.constant 2 : index
    %248 = arith.index_cast %5 : i32 to index
    %c0_89 = arith.constant 0 : index
    %249 = vector.load %arg2[%c2_88, %248, %c0_89] : memref<30x8x128xf32, #tpu.memory_space<vmem>>, vector<1x8x128xf32>
    %250 = vector.shape_cast %249 : vector<1x8x128xf32> to vector<8x128xf32>
    %c3_90 = arith.constant 3 : index
    %251 = arith.index_cast %5 : i32 to index
    %c0_91 = arith.constant 0 : index
    %252 = vector.load %arg2[%c3_90, %251, %c0_91] : memref<30x8x128xf32, #tpu.memory_space<vmem>>, vector<1x8x128xf32>
    %253 = vector.shape_cast %252 : vector<1x8x128xf32> to vector<8x128xf32>
    %c4_92 = arith.constant 4 : index
    %254 = arith.index_cast %5 : i32 to index
    %c0_93 = arith.constant 0 : index
    %255 = vector.load %arg2[%c4_92, %254, %c0_93] : memref<30x8x128xf32, #tpu.memory_space<vmem>>, vector<1x8x128xf32>
    %256 = vector.shape_cast %255 : vector<1x8x128xf32> to vector<8x128xf32>
    %cst_94 = arith.constant 0.142857149 : f32
    %257 = vector.broadcast %cst_94 : f32 to vector<8x128xf32>
    %258 = arith.mulf %244, %257 : vector<8x128xf32>
    %cst_95 = arith.constant 0.142857149 : f32
    %259 = vector.broadcast %cst_95 : f32 to vector<8x128xf32>
    %260 = arith.mulf %247, %259 : vector<8x128xf32>
    %cst_96 = arith.constant 5.000000e-01 : f32
    %261 = vector.broadcast %cst_96 : f32 to vector<8x128xf32>
    %262 = arith.mulf %261, %250 : vector<8x128xf32>
    %263 = arith.subf %258, %262 : vector<8x128xf32>
    %cst_97 = arith.constant 5.000000e-01 : f32
    %264 = vector.broadcast %cst_97 : f32 to vector<8x128xf32>
    %265 = arith.mulf %264, %253 : vector<8x128xf32>
    %266 = arith.subf %260, %265 : vector<8x128xf32>
    %cst_98 = arith.constant 5.000000e-01 : f32
    %267 = vector.broadcast %cst_98 : f32 to vector<8x128xf32>
    %268 = arith.mulf %267, %250 : vector<8x128xf32>
    %269 = arith.addf %258, %268 : vector<8x128xf32>
    %cst_99 = arith.constant 5.000000e-01 : f32
    %270 = vector.broadcast %cst_99 : f32 to vector<8x128xf32>
    %271 = arith.mulf %270, %253 : vector<8x128xf32>
    %272 = arith.addf %260, %271 : vector<8x128xf32>
    %273 = arith.minimumf %269, %237 : vector<8x128xf32>
    %274 = arith.maximumf %263, %231 : vector<8x128xf32>
    %275 = arith.subf %273, %274 : vector<8x128xf32>
    %cst_100 = arith.constant 0.000000e+00 : f32
    %276 = vector.broadcast %cst_100 : f32 to vector<8x128xf32>
    %277 = arith.maximumf %275, %276 : vector<8x128xf32>
    %278 = arith.minimumf %272, %240 : vector<8x128xf32>
    %279 = arith.maximumf %266, %234 : vector<8x128xf32>
    %280 = arith.subf %278, %279 : vector<8x128xf32>
    %cst_101 = arith.constant 0.000000e+00 : f32
    %281 = vector.broadcast %cst_101 : f32 to vector<8x128xf32>
    %282 = arith.maximumf %280, %281 : vector<8x128xf32>
    %283 = arith.mulf %277, %282 : vector<8x128xf32>
    %284 = arith.mulf %250, %253 : vector<8x128xf32>
    %285 = arith.addf %284, %241 : vector<8x128xf32>
    %286 = arith.subf %285, %283 : vector<8x128xf32>
    %cst_102 = arith.constant 9.99999971E-10 : f32
    %287 = vector.broadcast %cst_102 : f32 to vector<8x128xf32>
    %288 = arith.addf %286, %287 : vector<8x128xf32>
    %289 = tpu.reciprocal %288 {approx = true} : vector<8x128xf32> -> vector<8x128xf32>
    %290 = arith.mulf %283, %289 : vector<8x128xf32>
    %c5 = arith.constant 5 : index
    %291 = arith.index_cast %5 : i32 to index
    %c0_103 = arith.constant 0 : index
    %292 = vector.load %arg2[%c5, %291, %c0_103] : memref<30x8x128xf32, #tpu.memory_space<vmem>>, vector<1x8x128xf32>
    %293 = vector.shape_cast %292 : vector<1x8x128xf32> to vector<8x128xf32>
    %c6 = arith.constant 6 : index
    %294 = arith.index_cast %5 : i32 to index
    %c0_104 = arith.constant 0 : index
    %295 = vector.load %arg2[%c6, %294, %c0_104] : memref<30x8x128xf32, #tpu.memory_space<vmem>>, vector<1x8x128xf32>
    %296 = vector.shape_cast %295 : vector<1x8x128xf32> to vector<8x128xf32>
    %c7 = arith.constant 7 : index
    %297 = arith.index_cast %5 : i32 to index
    %c0_105 = arith.constant 0 : index
    %298 = vector.load %arg2[%c7, %297, %c0_105] : memref<30x8x128xf32, #tpu.memory_space<vmem>>, vector<1x8x128xf32>
    %299 = vector.shape_cast %298 : vector<1x8x128xf32> to vector<8x128xf32>
    %c8 = arith.constant 8 : index
    %300 = arith.index_cast %5 : i32 to index
    %c0_106 = arith.constant 0 : index
    %301 = vector.load %arg2[%c8, %300, %c0_106] : memref<30x8x128xf32, #tpu.memory_space<vmem>>, vector<1x8x128xf32>
    %302 = vector.shape_cast %301 : vector<1x8x128xf32> to vector<8x128xf32>
    %c9_107 = arith.constant 9 : index
    %303 = arith.index_cast %5 : i32 to index
    %c0_108 = arith.constant 0 : index
    %304 = vector.load %arg2[%c9_107, %303, %c0_108] : memref<30x8x128xf32, #tpu.memory_space<vmem>>, vector<1x8x128xf32>
    %305 = vector.shape_cast %304 : vector<1x8x128xf32> to vector<8x128xf32>
    %cst_109 = arith.constant 0.142857149 : f32
    %306 = vector.broadcast %cst_109 : f32 to vector<8x128xf32>
    %307 = arith.mulf %293, %306 : vector<8x128xf32>
    %cst_110 = arith.constant 0.142857149 : f32
    %308 = vector.broadcast %cst_110 : f32 to vector<8x128xf32>
    %309 = arith.mulf %296, %308 : vector<8x128xf32>
    %cst_111 = arith.constant 5.000000e-01 : f32
    %310 = vector.broadcast %cst_111 : f32 to vector<8x128xf32>
    %311 = arith.mulf %310, %299 : vector<8x128xf32>
    %312 = arith.subf %307, %311 : vector<8x128xf32>
    %cst_112 = arith.constant 5.000000e-01 : f32
    %313 = vector.broadcast %cst_112 : f32 to vector<8x128xf32>
    %314 = arith.mulf %313, %302 : vector<8x128xf32>
    %315 = arith.subf %309, %314 : vector<8x128xf32>
    %cst_113 = arith.constant 5.000000e-01 : f32
    %316 = vector.broadcast %cst_113 : f32 to vector<8x128xf32>
    %317 = arith.mulf %316, %299 : vector<8x128xf32>
    %318 = arith.addf %307, %317 : vector<8x128xf32>
    %cst_114 = arith.constant 5.000000e-01 : f32
    %319 = vector.broadcast %cst_114 : f32 to vector<8x128xf32>
    %320 = arith.mulf %319, %302 : vector<8x128xf32>
    %321 = arith.addf %309, %320 : vector<8x128xf32>
    %322 = arith.minimumf %318, %237 : vector<8x128xf32>
    %323 = arith.maximumf %312, %231 : vector<8x128xf32>
    %324 = arith.subf %322, %323 : vector<8x128xf32>
    %cst_115 = arith.constant 0.000000e+00 : f32
    %325 = vector.broadcast %cst_115 : f32 to vector<8x128xf32>
    %326 = arith.maximumf %324, %325 : vector<8x128xf32>
    %327 = arith.minimumf %321, %240 : vector<8x128xf32>
    %328 = arith.maximumf %315, %234 : vector<8x128xf32>
    %329 = arith.subf %327, %328 : vector<8x128xf32>
    %cst_116 = arith.constant 0.000000e+00 : f32
    %330 = vector.broadcast %cst_116 : f32 to vector<8x128xf32>
    %331 = arith.maximumf %329, %330 : vector<8x128xf32>
    %332 = arith.mulf %326, %331 : vector<8x128xf32>
    %333 = arith.mulf %299, %302 : vector<8x128xf32>
    %334 = arith.addf %333, %241 : vector<8x128xf32>
    %335 = arith.subf %334, %332 : vector<8x128xf32>
    %cst_117 = arith.constant 9.99999971E-10 : f32
    %336 = vector.broadcast %cst_117 : f32 to vector<8x128xf32>
    %337 = arith.addf %335, %336 : vector<8x128xf32>
    %338 = tpu.reciprocal %337 {approx = true} : vector<8x128xf32> -> vector<8x128xf32>
    %339 = arith.mulf %332, %338 : vector<8x128xf32>
    %340 = arith.cmpf ogt, %339, %290 : vector<8x128xf32>
    %341 = arith.select %340, %339, %290 : vector<8x128xi1>, vector<8x128xf32>
    %342 = arith.select %340, %293, %244 : vector<8x128xi1>, vector<8x128xf32>
    %343 = arith.select %340, %296, %247 : vector<8x128xi1>, vector<8x128xf32>
    %344 = arith.select %340, %299, %250 : vector<8x128xi1>, vector<8x128xf32>
    %345 = arith.select %340, %302, %253 : vector<8x128xi1>, vector<8x128xf32>
    %346 = arith.select %340, %305, %256 : vector<8x128xi1>, vector<8x128xf32>
    %c5_118 = arith.constant 5 : index
    %347 = arith.index_cast %5 : i32 to index
    %c0_119 = arith.constant 0 : index
    %348 = vector.load %arg3[%c5_118, %347, %c0_119] : memref<30x8x128xf32, #tpu.memory_space<vmem>>, vector<1x8x128xf32>
    %349 = vector.shape_cast %348 : vector<1x8x128xf32> to vector<8x128xf32>
    %350 = arith.select %340, %349, %215 : vector<8x128xi1>, vector<8x128xf32>
    %c6_120 = arith.constant 6 : index
    %351 = arith.index_cast %5 : i32 to index
    %c0_121 = arith.constant 0 : index
    %352 = vector.load %arg3[%c6_120, %351, %c0_121] : memref<30x8x128xf32, #tpu.memory_space<vmem>>, vector<1x8x128xf32>
    %353 = vector.shape_cast %352 : vector<1x8x128xf32> to vector<8x128xf32>
    %354 = arith.select %340, %353, %218 : vector<8x128xi1>, vector<8x128xf32>
    %c7_122 = arith.constant 7 : index
    %355 = arith.index_cast %5 : i32 to index
    %c0_123 = arith.constant 0 : index
    %356 = vector.load %arg3[%c7_122, %355, %c0_123] : memref<30x8x128xf32, #tpu.memory_space<vmem>>, vector<1x8x128xf32>
    %357 = vector.shape_cast %356 : vector<1x8x128xf32> to vector<8x128xf32>
    %358 = arith.select %340, %357, %221 : vector<8x128xi1>, vector<8x128xf32>
    %c8_124 = arith.constant 8 : index
    %359 = arith.index_cast %5 : i32 to index
    %c0_125 = arith.constant 0 : index
    %360 = vector.load %arg3[%c8_124, %359, %c0_125] : memref<30x8x128xf32, #tpu.memory_space<vmem>>, vector<1x8x128xf32>
    %361 = vector.shape_cast %360 : vector<1x8x128xf32> to vector<8x128xf32>
    %362 = arith.select %340, %361, %224 : vector<8x128xi1>, vector<8x128xf32>
    %363 = arith.subf %342, %350 : vector<8x128xf32>
    %364 = arith.mulf %363, %363 : vector<8x128xf32>
    %365 = arith.subf %343, %354 : vector<8x128xf32>
    %366 = arith.mulf %365, %365 : vector<8x128xf32>
    %367 = arith.addf %364, %366 : vector<8x128xf32>
    %368 = math.sqrt %344 : vector<8x128xf32>
    %369 = math.sqrt %358 : vector<8x128xf32>
    %370 = arith.subf %368, %369 : vector<8x128xf32>
    %371 = arith.mulf %370, %370 : vector<8x128xf32>
    %372 = math.sqrt %345 : vector<8x128xf32>
    %373 = math.sqrt %362 : vector<8x128xf32>
    %374 = arith.subf %372, %373 : vector<8x128xf32>
    %375 = arith.mulf %374, %374 : vector<8x128xf32>
    %376 = arith.addf %371, %375 : vector<8x128xf32>
    %377 = arith.subf %346, %341 : vector<8x128xf32>
    %378 = arith.mulf %377, %377 : vector<8x128xf32>
    %379 = arith.addf %367, %376 : vector<8x128xf32>
    %cst_126 = arith.constant 5.000000e+00 : f32
    %380 = vector.broadcast %cst_126 : f32 to vector<8x128xf32>
    %381 = arith.mulf %380, %379 : vector<8x128xf32>
    %382 = arith.addf %381, %378 : vector<8x128xf32>
    %383 = arith.addf %382, %212 : vector<8x128xf32>
    %cst_127 = arith.constant 0.000000e+00 : f32
    %384 = vector.broadcast %cst_127 : f32 to vector<8x128xf32>
    %385 = arith.select %10, %383, %384 : vector<8x128xi1>, vector<8x128xf32>
    %cst_128 = arith.constant 5.000000e-01 : f32
    %386 = vector.broadcast %cst_128 : f32 to vector<8x128xf32>
    %387 = arith.mulf %386, %31 : vector<8x128xf32>
    %cst_129 = arith.constant 0.000000e+00 : f32
    %388 = vector.broadcast %cst_129 : f32 to vector<8x128xf32>
    %389 = arith.select %12, %387, %388 : vector<8x128xi1>, vector<8x128xf32>
    %390 = arith.addf %385, %389 : vector<8x128xf32>
    %391 = arith.addf %3, %390 : vector<8x128xf32>
    %c1_i32 = arith.constant 1 : i32
    %c0_130 = arith.constant 0 : index
    %c0_131 = arith.constant 0 : index
    %c0_132 = arith.constant 0 : index
    %392 = vector.load %arg4[%c0_130, %c0_131, %c0_132] : memref<1x8x128xf32, #tpu.memory_space<vmem>>, vector<1x8x128xf32>
    %393 = vector.shape_cast %391 : vector<8x128xf32> to vector<1x8x128xf32>
    %394 = arith.addf %392, %393 : vector<1x8x128xf32>
    %c0_133 = arith.constant 0 : index
    %c0_134 = arith.constant 0 : index
    %c0_135 = arith.constant 0 : index
    %395 = vector.load %arg4[%c0_133, %c0_134, %c0_135] : memref<1x8x128xf32, #tpu.memory_space<vmem>>, vector<1x8x128xf32>
    tpu.vector_store %arg4[%c0_133, %c0_134, %c0_135], %394 {strides = array<i32>} : memref<1x8x128xf32, #tpu.memory_space<vmem>>, vector<1x8x128xf32>,
    return
  }
  func.func @transform_0(%arg0: i32, %arg1: i32) -> (i32, i32, i32) {
    %c1_i32 = arith.constant 1 : i32
    %0 = arith.muli %arg0, %c1_i32 : i32
    %1 = arith.addi %0, %arg1 : i32
    %c0_i32 = arith.constant 0 : i32
    %c0_i32_0 = arith.constant 0 : i32
    %c0_i32_1 = arith.constant 0 : i32
    return %c0_i32, %1, %c0_i32_0 : i32, i32, i32
  }
  func.func @transform_1(%arg0: i32, %arg1: i32) -> (i32, i32, i32) {
    %c1_i32 = arith.constant 1 : i32
    %0 = arith.muli %arg0, %c1_i32 : i32
    %1 = arith.addi %0, %arg1 : i32
    %c0_i32 = arith.constant 0 : i32
    %c0_i32_0 = arith.constant 0 : i32
    %c0_i32_1 = arith.constant 0 : i32
    return %c0_i32, %1, %c0_i32_0 : i32, i32, i32
  }
  func.func @transform_2(%arg0: i32, %arg1: i32) -> (i32, i32, i32) {
    %c0_i32 = arith.constant 0 : i32
    %c0_i32_0 = arith.constant 0 : i32
    %c0_i32_1 = arith.constant 0 : i32
    return %arg0, %c0_i32, %c0_i32_0 : i32, i32, i32
  }
}

</mosaic_0001>

<llo_original>
// kernel: tpu_custom_call.1
$region0: #{tpu_custom_call.1}
  #allocation0 [shape = 'u32[]', space=smem, size = 0x4, offset = 0x4, fixed_abs, tag = 'smem constant byte address 0x4 - core index']
  #allocation1 [shape = 'u32[144,128]{1,0:T(1,128)}', space=vmem, size = 0x12000, scoped, tag = 'internal scratch']
  %s0 = inlined_call_operand.hbm [shape: f32[30,16,128], index: 0, kind: input, shape index: {}]
  %s1 = inlined_call_operand.hbm [shape: f32[30,16,128], index: 1, kind: input, shape index: {}]
  %s2 = inlined_call_operand.hbm [shape: f32[2,8,128], index: 2, kind: output, shape index: {}]
  %s3 = sld [smem:[#allocation0]]
  $region53: #{tpu_custom_call.1} parent=0
    _
  %s5 = ssub.s32 1, %s3
  %s6 = scalar_select 0, %s5, %s3
  $region1: #{tpu_custom_call.1} parent=0
    #allocation2 [shape = 'u8[245760]{0}', space=vmem, size = 0x3c000, scoped, tag = 'input window, operand 0']
    #allocation3 [shape = 's32[2]{0}', space=sflag, size = 0x8, scoped, tag = 'scoped memory for tpu_custom_call.1']
    #allocation4 [shape = 's32[2]{0}', space=sflag, size = 0x8, scoped, tag = 'scoped memory for tpu_custom_call.1']
    #allocation5 [shape = 'u8[245760]{0}', space=vmem, size = 0x3c000, scoped, tag = 'input window, operand 1']
    #allocation6 [shape = 's32[2]{0}', space=sflag, size = 0x8, scoped, tag = 'scoped memory for tpu_custom_call.1']
    #allocation7 [shape = 'u8[8192]{0}', space=vmem, size = 0x2000, scoped, tag = 'output window, operand 0']
    %7 = vsyncpa [#allocation3], 0
    %s8 = scalar_lea.sflag [#allocation3], 1
    %9 = vsyncpa %s8, 0
    %10 = vsyncpa [#allocation6], 0
    %s11 = scalar_lea.sflag [#allocation6], 1
    %12 = vsyncpa %s11, 0
    %13 = vsyncpa [#allocation4], 0
    %s14 = scalar_lea.sflag [#allocation4], 1
    %15 = vsyncpa %s14, 0
    loop: start=0, step=1, limit=4
    $region2: #{tpu_custom_call.1} parent=1 // loop_pre_header
      _
    $region3: #{tpu_custom_call.1} parent=1 // loop_header
      %s17 = sphi 0, %s21
      %p18 = scmp.ge.s32.totalorder %s17, 4
      %s24 = sphi 0, %s36
      %s25 = sphi 0, %s32
      %s26 = sphi 0, %s24
      %s27 = sphi 0, %s25
      %s28 = sphi 0, %s26
      %s29 = sphi 0, %s27
      %s41 = sphi 0, %s43
      %s44 = sphi 0, %s41
      %s45 = sphi 0, %s44
      %s61 = sphi 0, %s45
      %s69 = sphi 0, %s71
      %s72 = sphi 0, %s69
      %s73 = sphi 0, %s72
      %s89 = sphi 0, %s73
      %s95 = sphi 0, %s97
      %s98 = sphi 0, %s95
      %s99 = sphi 0, %s98
      %s115 = sphi 0, %s99
    $region4: #{tpu_custom_call.1} parent=1 // loop_header_branch
      %20 = sbr.rel (%p18) target = $region8
    $region5: #{tpu_custom_call.1} parent=1 // loop_body
      %s22 = ssub.s32 %s17, 1
      %s23 = ssub.s32 %s17, 2
      %s30 = sadd.s32 1, %s25
      %p31 = scmp.ge.s32.totalorder %s30, 1
      %s32 = scalar_select %p31, 0, %s30
      %s33 = sadd.s32 1, %s24
      %s34 = scalar_select %p31, %s33, %s24
      %p35 = scmp.ge.s32.totalorder %s34, 2
      %s36 = scalar_select %p35, 0, %s34
      %s37 = sadd.s32 %s24, %s25
      %s38 = sadd.s32 %s36, %s32
      %s39 = ssub.s32 %s37, %s38
      %p40 = scmp.eq.s32.totalorder %s39, 0
      %s42 = sadd.s32 %s41, 1
      %s43 = scalar_select %p40, %s41, %s42
      %p46 = pneg %p40
      %p47 = scmp.eq.s32.totalorder %s17, 1
      %p48 = por %p46, %p47
      %p49 = scmp.ne.s32.totalorder %s41, %s44
      %p50 = scmp.eq.s32.totalorder %s17, 0
      %p51 = por %p49, %p50
      %p52 = scmp.ne.s32.totalorder %s41, %s44
      %p53 = scmp.eq.s32.totalorder %s22, 1
      %p54 = por %p52, %p53
      %p55 = scmp.ne.s32.totalorder %s44, %s45
      %p56 = scmp.eq.s32.totalorder %s22, 0
      %p57 = por %p55, %p56
      %p58 = scmp.ne.s32.totalorder %s44, %s45
      %p59 = scmp.eq.s32.totalorder %s23, 1
      %p60 = por %p58, %p59
      %p62 = scmp.ne.s32.totalorder %s45, %s61
      %p63 = scmp.eq.s32.totalorder %s23, 0
      %p64 = por %p62, %p63
      %s65 = sadd.s32 %s24, %s25
      %s66 = sadd.s32 %s36, %s32
      %s67 = ssub.s32 %s65, %s66
      %p68 = scmp.eq.s32.totalorder %s67, 0
      %s70 = sadd.s32 %s69, 1
      %s71 = scalar_select %p68, %s69, %s70
      %p74 = pneg %p68
      %p75 = scmp.eq.s32.totalorder %s17, 1
      %p76 = por %p74, %p75
      %p77 = scmp.ne.s32.totalorder %s69, %s72
      %p78 = scmp.eq.s32.totalorder %s17, 0
      %p79 = por %p77, %p78
      %p80 = scmp.ne.s32.totalorder %s69, %s72
      %p81 = scmp.eq.s32.totalorder %s22, 1
      %p82 = por %p80, %p81
      %p83 = scmp.ne.s32.totalorder %s72, %s73
      %p84 = scmp.eq.s32.totalorder %s22, 0
      %p85 = por %p83, %p84
      %p86 = scmp.ne.s32.totalorder %s72, %s73
      %p87 = scmp.eq.s32.totalorder %s23, 1
      %p88 = por %p86, %p87
      %p90 = scmp.ne.s32.totalorder %s73, %s89
      %p91 = scmp.eq.s32.totalorder %s23, 0
      %p92 = por %p90, %p91
      %s93 = ssub.s32 %s24, %s36
      %p94 = scmp.eq.s32.totalorder %s93, 0
      %s96 = sadd.s32 %s95, 1
      %s97 = scalar_select %p94, %s95, %s96
      %p100 = pneg %p94
      %p101 = scmp.eq.s32.totalorder %s17, 1
      %p102 = por %p100, %p101
      %p103 = scmp.ne.s32.totalorder %s95, %s98
      %p104 = scmp.eq.s32.totalorder %s17, 0
      %p105 = por %p103, %p104
      %p106 = scmp.ne.s32.totalorder %s95, %s98
      %p107 = scmp.eq.s32.totalorder %s22, 1
      %p108 = por %p106, %p107
      %p109 = scmp.ne.s32.totalorder %s98, %s99
      %p110 = scmp.eq.s32.totalorder %s22, 0
      %p111 = por %p109, %p110
      %p112 = scmp.ne.s32.totalorder %s98, %s99
      %p113 = scmp.eq.s32.totalorder %s23, 1
      %p114 = por %p112, %p113
      %p116 = scmp.ne.s32.totalorder %s99, %s115
      %p117 = scmp.eq.s32.totalorder %s23, 0
      %p118 = por %p116, %p117
      %p119 = scmp.le.s32.totalorder 1, %s17
      %p120 = scmp.lt.s32.totalorder %s17, 3
      %p121 = pnand %p119, %p120
      %p122 = pneg %p121
      // Predicated region
      $region9: #{tpu_custom_call.1} parent=5 // pred_check
        _
      $region10: #{tpu_custom_call.1} parent=5 // pred_check_branch
        %124 = sbr.rel (%p121) target = $region12
      $region11: #{tpu_custom_call.1} parent=5 // pred_region
        %s125 = ssub.s32 %s17, 1
      $region12: #{tpu_custom_call.1} parent=5 // pred_fallthru
        _
      %p126 = scmp.lt.s32.totalorder %s17, 2
      // Predicated region
      $region13: #{tpu_custom_call.1} parent=5 // pred_check
        %p127 = pneg %p126
      $region14: #{tpu_custom_call.1} parent=5 // pred_check_branch
        %129 = sbr.rel (%p127) target = $region16
      $region15: #{tpu_custom_call.1} parent=5 // pred_region
        // Predicated region
        $region17: #{tpu_custom_call.1} parent=15 // pred_check
          %p130 = pneg %p51
        $region18: #{tpu_custom_call.1} parent=15 // pred_check_branch
          %132 = sbr.rel (%p130) target = $region20
        $region19: #{tpu_custom_call.1} parent=15 // pred_region
          %s133 = sand.u32 %s41, 1
          %s134 = scalar_lea.sflag [#allocation3], %s133
          %s135 = sand.u32 %s41, 1
          %s136 = smul.addr %s135, 240
          %s137 = scalar_lea.vmem [#allocation2], %s136
          %s138 = sadd.s32 %s24, %s25
          %s140 = ssub.s32 3840, 3840
          %141 = vsyncadd %s134, %s140
          %s142 = smul.addr %s138, 128
          %s143 = scalar_lea.hbm %s0, %s142
          %s144 = sshll.u32 %s137, 4
          %s145 = int_to_ptr.vmem [resolvable:$true] %s144
          %150 = dma.hbm_to_vmem [thread:$0]  %s143, 3840, %s145, %s134, 256, 128, 8
        $region20: #{tpu_custom_call.1} parent=15 // pred_fallthru
          _
        // Predicated region
        $region21: #{tpu_custom_call.1} parent=15 // pred_check
          %p151 = pneg %p79
        $region22: #{tpu_custom_call.1} parent=15 // pred_check_branch
          %153 = sbr.rel (%p151) target = $region24
        $region23: #{tpu_custom_call.1} parent=15 // pred_region
          %s154 = sand.u32 %s69, 1
          %s155 = scalar_lea.sflag [#allocation6], %s154
          %s156 = sand.u32 %s69, 1
          %s157 = smul.addr %s156, 240
          %s158 = scalar_lea.vmem [#allocation5], %s157
          %s159 = sadd.s32 %s24, %s25
          %s161 = ssub.s32 3840, 3840
          %162 = vsyncadd %s155, %s161
          %s163 = smul.addr %s159, 128
          %s164 = scalar_lea.hbm %s1, %s163
          %s165 = sshll.u32 %s158, 4
          %s166 = int_to_ptr.vmem [resolvable:$true] %s165
          %171 = dma.hbm_to_vmem [thread:$0]  %s164, 3840, %s166, %s155, 256, 128, 8
        $region24: #{tpu_custom_call.1} parent=15 // pred_fallthru
          _
      $region16: #{tpu_custom_call.1} parent=5 // pred_fallthru
        _
      %p172 = scmp.le.s32.totalorder 1, %s17
      %p173 = scmp.lt.s32.totalorder %s17, 3
      %p174 = pnand %p172, %p173
      %p175 = pneg %p174
      // Predicated region
      $region25: #{tpu_custom_call.1} parent=5 // pred_check
        _
      $region26: #{tpu_custom_call.1} parent=5 // pred_check_branch
        %177 = sbr.rel (%p174) target = $region28
      $region27: #{tpu_custom_call.1} parent=5 // pred_region
        %s178 = ssub.s32 %s17, 1
        %s179 = sand.u32 %s44, 1
        %s180 = scalar_lea.sflag [#allocation3], %s179
        %s181 = sand.u32 %s44, 1
        %s182 = smul.addr %s181, 240
        %s183 = scalar_lea.vmem [#allocation2], %s182
        // Predicated region
        $region29: #{tpu_custom_call.1} parent=27 // pred_check
          %p184 = pneg %p57
        $region30: #{tpu_custom_call.1} parent=27 // pred_check_branch
          %186 = sbr.rel (%p184) target = $region32
        $region31: #{tpu_custom_call.1} parent=27 // pred_region
          %187 = dma.done %s180, 3840
        $region32: #{tpu_custom_call.1} parent=27 // pred_fallthru
          _
        %s188 = sand.u32 %s72, 1
        %s189 = scalar_lea.sflag [#allocation6], %s188
        %s190 = sand.u32 %s72, 1
        %s191 = smul.addr %s190, 240
        %s192 = scalar_lea.vmem [#allocation5], %s191
        // Predicated region
        $region33: #{tpu_custom_call.1} parent=27 // pred_check
          %p193 = pneg %p85
        $region34: #{tpu_custom_call.1} parent=27 // pred_check_branch
          %195 = sbr.rel (%p193) target = $region36
        $region35: #{tpu_custom_call.1} parent=27 // pred_region
          %196 = dma.done %s189, 3840
        $region36: #{tpu_custom_call.1} parent=27 // pred_fallthru
          _
        %s197 = sand.u32 %s44, 1
        %s198 = scalar_lea.sflag [#allocation3], %s197
        %s199 = sand.u32 %s44, 1
        %s200 = smul.addr %s199, 240
        %s201 = scalar_lea.vmem [#allocation2], %s200
        %p202 = pneg %p57
        %p203 = pneg %p54
        %s204 = sand.u32 %s72, 1
        %s205 = scalar_lea.sflag [#allocation6], %s204
        %s206 = sand.u32 %s72, 1
        %s207 = smul.addr %s206, 240
        %s208 = scalar_lea.vmem [#allocation5], %s207
        %p209 = pneg %p85
        %p210 = pneg %p82
        %p211 = pneg %p111
        %p212 = pneg %p108
        %s213 = sand.u32 %s98, 1
        %s214 = scalar_lea.sflag [#allocation4], %s213
        %s215 = sand.u32 %s98, 1
        %s216 = smul.addr %s215, 8
        %s217 = scalar_lea.vmem [#allocation7], %s216
        %s218 = sadd.s32 %s26, %s27
        %s219 = sadd.s32 %s26, %s27
        %p220 = scmp.eq.s32.totalorder %s27, 0
        // Predicated region
        $region37: #{tpu_custom_call.1} parent=27 // pred_check
          %p221 = pneg %p220
        $region38: #{tpu_custom_call.1} parent=27 // pred_check_branch
          %223 = sbr.rel (%p221) target = $region40
        $region39: #{tpu_custom_call.1} parent=27 // pred_region
          %224 = vst [vmem:[%s217] sm:$0xff] 0.0
        $region40: #{tpu_custom_call.1} parent=27 // pred_fallthru
          _
        %s225 = sadd.s32 0, 32
        %s226 = scalar_lea.vmem %s192, %s225 [#allocation5]
        %v227 = vld [vmem:[%s226] sm:$0xff]
        %vm228 = vcmp.gt.f32.partialorder %v227, 0.0
        %vm229 = vcmp.eq.f32.partialorder %v227, 0.0
        %s230 = scalar_lea.vmem %s183, %s225 [#allocation2]
        %v231 = vld [vmem:[%s230] sm:$0xff]
        %v232 = vsub.f32 %v231, %v227
        %v233 = vmul.f32 %v232, %v232
        %v234 = vadd.f32 %v233, 0.0
        %s235 = sadd.s32 0, 72
        %s236 = scalar_lea.vmem %s183, %s235 [#allocation2]
        %v237 = vld [vmem:[%s236] sm:$0xff]
        %s238 = scalar_lea.vmem %s192, %s235 [#allocation5]
        %v239 = vld [vmem:[%s238] sm:$0xff]
        %v240 = vsub.f32 %v237, %v239
        %v241 = vmul.f32 %v240, %v240
        %v242 = vadd.f32 %v234, %v241
        %s243 = sadd.s32 0, 80
        %s244 = scalar_lea.vmem %s183, %s243 [#allocation2]
        %v245 = vld [vmem:[%s244] sm:$0xff]
        %s246 = scalar_lea.vmem %s192, %s243 [#allocation5]
        %v247 = vld [vmem:[%s246] sm:$0xff]
        %v248 = vsub.f32 %v245, %v247
        %v249 = vmul.f32 %v248, %v248
        %v250 = vadd.f32 %v249, 0.0
        %s251 = sadd.s32 0, 88
        %s252 = scalar_lea.vmem %s183, %s251 [#allocation2]
        %v253 = vld [vmem:[%s252] sm:$0xff]
        %s254 = scalar_lea.vmem %s192, %s251 [#allocation5]
        %v255 = vld [vmem:[%s254] sm:$0xff]
        %v256 = vsub.f32 %v253, %v255
        %v257 = vmul.f32 %v256, %v256
        %v258 = vadd.f32 %v250, %v257
        %s259 = sadd.s32 0, 96
        %s260 = scalar_lea.vmem %s183, %s259 [#allocation2]
        %v261 = vld [vmem:[%s260] sm:$0xff]
        %s262 = scalar_lea.vmem %s192, %s259 [#allocation5]
        %v263 = vld [vmem:[%s262] sm:$0xff]
        %v264 = vsub.f32 %v261, %v263
        %v265 = vmul.f32 %v264, %v264
        %v266 = vadd.f32 %v258, %v265
        %s267 = sadd.s32 0, 104
        %s268 = scalar_lea.vmem %s183, %s267 [#allocation2]
        %v269 = vld [vmem:[%s268] sm:$0xff]
        %s270 = scalar_lea.vmem %s192, %s267 [#allocation5]
        %v271 = vld [vmem:[%s270] sm:$0xff]
        %v272 = vsub.f32 %v269, %v271
        %v273 = vmul.f32 %v272, %v272
        %v274 = vadd.f32 %v266, %v273
        %s275 = sadd.s32 0, 112
        %s276 = scalar_lea.vmem %s183, %s275 [#allocation2]
        %v277 = vld [vmem:[%s276] sm:$0xff]
        %s278 = scalar_lea.vmem %s192, %s275 [#allocation5]
        %v279 = vld [vmem:[%s278] sm:$0xff]
        %v280 = vsub.f32 %v277, %v279
        %v281 = vmul.f32 %v280, %v280
        %v282 = vadd.f32 %v274, %v281
        %s283 = sadd.s32 0, 120
        %s284 = scalar_lea.vmem %s183, %s283 [#allocation2]
        %v285 = vld [vmem:[%s284] sm:$0xff]
        %s286 = scalar_lea.vmem %s192, %s283 [#allocation5]
        %v287 = vld [vmem:[%s286] sm:$0xff]
        %v288 = vsub.f32 %v285, %v287
        %v289 = vmul.f32 %v288, %v288
        %v290 = vadd.f32 %v282, %v289
        %s291 = sadd.s32 0, 128
        %s292 = scalar_lea.vmem %s183, %s291 [#allocation2]
        %v293 = vld [vmem:[%s292] sm:$0xff]
        %s294 = scalar_lea.vmem %s192, %s291 [#allocation5]
        %v295 = vld [vmem:[%s294] sm:$0xff]
        %v296 = vsub.f32 %v293, %v295
        %v297 = vmul.f32 %v296, %v296
        %v298 = vadd.f32 %v290, %v297
        %s299 = sadd.s32 0, 136
        %s300 = scalar_lea.vmem %s183, %s299 [#allocation2]
        %v301 = vld [vmem:[%s300] sm:$0xff]
        %s302 = scalar_lea.vmem %s192, %s299 [#allocation5]
        %v303 = vld [vmem:[%s302] sm:$0xff]
        %v304 = vsub.f32 %v301, %v303
        %v305 = vmul.f32 %v304, %v304
        %v306 = vadd.f32 %v298, %v305
        %s307 = sadd.s32 0, 144
        %s308 = scalar_lea.vmem %s183, %s307 [#allocation2]
        %v309 = vld [vmem:[%s308] sm:$0xff]
        %s310 = scalar_lea.vmem %s192, %s307 [#allocation5]
        %v311 = vld [vmem:[%s310] sm:$0xff]
        %v312 = vsub.f32 %v309, %v311
        %v313 = vmul.f32 %v312, %v312
        %v314 = vadd.f32 %v306, %v313
        %s315 = sadd.s32 0, 152
        %s316 = scalar_lea.vmem %s183, %s315 [#allocation2]
        %v317 = vld [vmem:[%s316] sm:$0xff]
        %s318 = scalar_lea.vmem %s192, %s315 [#allocation5]
        %v319 = vld [vmem:[%s318] sm:$0xff]
        %v320 = vsub.f32 %v317, %v319
        %v321 = vmul.f32 %v320, %v320
        %v322 = vadd.f32 %v314, %v321
        %s323 = sadd.s32 0, 160
        %s324 = scalar_lea.vmem %s183, %s323 [#allocation2]
        %v325 = vld [vmem:[%s324] sm:$0xff]
        %s326 = scalar_lea.vmem %s192, %s323 [#allocation5]
        %v327 = vld [vmem:[%s326] sm:$0xff]
        %v328 = vsub.f32 %v325, %v327
        %v329 = vmul.f32 %v328, %v328
        %v330 = vadd.f32 %v322, %v329
        %s331 = sadd.s32 0, 168
        %s332 = scalar_lea.vmem %s183, %s331 [#allocation2]
        %v333 = vld [vmem:[%s332] sm:$0xff]
        %s334 = scalar_lea.vmem %s192, %s331 [#allocation5]
        %v335 = vld [vmem:[%s334] sm:$0xff]
        %v336 = vsub.f32 %v333, %v335
        %v337 = vmul.f32 %v336, %v336
        %v338 = vadd.f32 %v330, %v337
        %s339 = sadd.s32 0, 176
        %s340 = scalar_lea.vmem %s183, %s339 [#allocation2]
        %v341 = vld [vmem:[%s340] sm:$0xff]
        %s342 = scalar_lea.vmem %s192, %s339 [#allocation5]
        %v343 = vld [vmem:[%s342] sm:$0xff]
        %v344 = vsub.f32 %v341, %v343
        %v345 = vmul.f32 %v344, %v344
        %v346 = vadd.f32 %v338, %v345
        %s347 = sadd.s32 0, 184
        %s348 = scalar_lea.vmem %s183, %s347 [#allocation2]
        %v349 = vld [vmem:[%s348] sm:$0xff]
        %s350 = scalar_lea.vmem %s192, %s347 [#allocation5]
        %v351 = vld [vmem:[%s350] sm:$0xff]
        %v352 = vsub.f32 %v349, %v351
        %v353 = vmul.f32 %v352, %v352
        %v354 = vadd.f32 %v346, %v353
        %s355 = sadd.s32 0, 192
        %s356 = scalar_lea.vmem %s183, %s355 [#allocation2]
        %v357 = vld [vmem:[%s356] sm:$0xff]
        %s358 = scalar_lea.vmem %s192, %s355 [#allocation5]
        %v359 = vld [vmem:[%s358] sm:$0xff]
        %v360 = vsub.f32 %v357, %v359
        %v361 = vmul.f32 %v360, %v360
        %v362 = vadd.f32 %v354, %v361
        %s363 = sadd.s32 0, 200
        %s364 = scalar_lea.vmem %s183, %s363 [#allocation2]
        %v365 = vld [vmem:[%s364] sm:$0xff]
        %s366 = scalar_lea.vmem %s192, %s363 [#allocation5]
        %v367 = vld [vmem:[%s366] sm:$0xff]
        %v368 = vsub.f32 %v365, %v367
        %v369 = vmul.f32 %v368, %v368
        %v370 = vadd.f32 %v362, %v369
        %s371 = sadd.s32 0, 208
        %s372 = scalar_lea.vmem %s183, %s371 [#allocation2]
        %v373 = vld [vmem:[%s372] sm:$0xff]
        %s374 = scalar_lea.vmem %s192, %s371 [#allocation5]
        %v375 = vld [vmem:[%s374] sm:$0xff]
        %v376 = vsub.f32 %v373, %v375
        %v377 = vmul.f32 %v376, %v376
        %v378 = vadd.f32 %v370, %v377
        %s379 = sadd.s32 0, 216
        %s380 = scalar_lea.vmem %s183, %s379 [#allocation2]
        %v381 = vld [vmem:[%s380] sm:$0xff]
        %s382 = scalar_lea.vmem %s192, %s379 [#allocation5]
        %v383 = vld [vmem:[%s382] sm:$0xff]
        %v384 = vsub.f32 %v381, %v383
        %v385 = vmul.f32 %v384, %v384
        %v386 = vadd.f32 %v378, %v385
        %s387 = sadd.s32 0, 224
        %s388 = scalar_lea.vmem %s183, %s387 [#allocation2]
        %v389 = vld [vmem:[%s388] sm:$0xff]
        %s390 = scalar_lea.vmem %s192, %s387 [#allocation5]
        %v391 = vld [vmem:[%s390] sm:$0xff]
        %v392 = vsub.f32 %v389, %v391
        %v393 = vmul.f32 %v392, %v392
        %v394 = vadd.f32 %v386, %v393
        %s395 = sadd.s32 0, 232
        %s396 = scalar_lea.vmem %s183, %s395 [#allocation2]
        %v397 = vld [vmem:[%s396] sm:$0xff]
        %s398 = scalar_lea.vmem %s192, %s395 [#allocation5]
        %v399 = vld [vmem:[%s398] sm:$0xff]
        %v400 = vsub.f32 %v397, %v399
        %v401 = vmul.f32 %v400, %v400
        %v402 = vadd.f32 %v394, %v401
        %v403 = vld [vmem:[%s192] sm:$0xff]
        %s404 = sadd.s32 0, 8
        %s405 = scalar_lea.vmem %s192, %s404 [#allocation5]
        %v406 = vld [vmem:[%s405] sm:$0xff]
        %s407 = sadd.s32 0, 16
        %s408 = scalar_lea.vmem %s192, %s407 [#allocation5]
        %v409 = vld [vmem:[%s408] sm:$0xff]
        %s410 = sadd.s32 0, 24
        %s411 = scalar_lea.vmem %s192, %s410 [#allocation5]
        %v412 = vld [vmem:[%s411] sm:$0xff]
        %v413 = vmul.f32 %v403, 0.14285715
        %v414 = vmul.f32 %v406, 0.14285715
        %v415 = vmul.f32 %v409, 0.5
        %v416 = vsub.f32 %v413, %v415
        %v417 = vmul.f32 %v412, 0.5
        %v418 = vsub.f32 %v414, %v417
        %v419 = vadd.f32 %v413, %v415
        %v420 = vadd.f32 %v414, %v417
        %v421 = vmul.f32 %v409, %v412
        %v422 = vld [vmem:[%s183] sm:$0xff]
        %s423 = scalar_lea.vmem %s183, %s404 [#allocation2]
        %v424 = vld [vmem:[%s423] sm:$0xff]
        %s425 = scalar_lea.vmem %s183, %s407 [#allocation2]
        %v426 = vld [vmem:[%s425] sm:$0xff]
        %s427 = scalar_lea.vmem %s183, %s410 [#allocation2]
        %v428 = vld [vmem:[%s427] sm:$0xff]
        %v429 = vmul.f32 %v422, 0.14285715
        %v430 = vmul.f32 %v424, 0.14285715
        %v431 = vmul.f32 %v426, 0.5
        %v432 = vsub.f32 %v429, %v431
        %v433 = vmul.f32 %v428, 0.5
        %v434 = vsub.f32 %v430, %v433
        %v435 = vadd.f32 %v429, %v431
        %v436 = vadd.f32 %v430, %v433
        %v437 = vmin.f32 %v435, %v419
        %v438 = vmax.f32 %v432, %v416
        %v439 = vsub.f32 %v437, %v438
        %v440 = vmax.f32 %v439, 0.0
        %v441 = vmin.f32 %v436, %v420
        %v442 = vmax.f32 %v434, %v418
        %v443 = vsub.f32 %v441, %v442
        %v444 = vmax.f32 %v443, 0.0
        %v445 = vmul.f32 %v440, %v444
        %v446 = vmul.f32 %v426, %v428
        %v447 = vadd.f32 %v446, %v421
        %v448 = vsub.f32 %v447, %v445
        %v449 = vadd.f32 %v448, 1e-09
        %v450 = vrcp.pop %v449
        %v451 = vmul.f32 %v445, %v450
        %s452 = sadd.s32 0, 40
        %s453 = scalar_lea.vmem %s183, %s452 [#allocation2]
        %v454 = vld [vmem:[%s453] sm:$0xff]
        %s455 = sadd.s32 0, 48
        %s456 = scalar_lea.vmem %s183, %s455 [#allocation2]
        %v457 = vld [vmem:[%s456] sm:$0xff]
        %s458 = sadd.s32 0, 56
        %s459 = scalar_lea.vmem %s183, %s458 [#allocation2]
        %v460 = vld [vmem:[%s459] sm:$0xff]
        %s461 = sadd.s32 0, 64
        %s462 = scalar_lea.vmem %s183, %s461 [#allocation2]
        %v463 = vld [vmem:[%s462] sm:$0xff]
        %v464 = vmul.f32 %v454, 0.14285715
        %v465 = vmul.f32 %v457, 0.14285715
        %v466 = vmul.f32 %v460, 0.5
        %v467 = vsub.f32 %v464, %v466
        %v468 = vmul.f32 %v463, 0.5
        %v469 = vsub.f32 %v465, %v468
        %v470 = vadd.f32 %v464, %v466
        %v471 = vadd.f32 %v465, %v468
        %v472 = vmin.f32 %v470, %v419
        %v473 = vmax.f32 %v467, %v416
        %v474 = vsub.f32 %v472, %v473
        %v475 = vmax.f32 %v474, 0.0
        %v476 = vmin.f32 %v471, %v420
        %v477 = vmax.f32 %v469, %v418
        %v478 = vsub.f32 %v476, %v477
        %v479 = vmax.f32 %v478, 0.0
        %v480 = vmul.f32 %v475, %v479
        %v481 = vmul.f32 %v460, %v463
        %v482 = vadd.f32 %v481, %v421
        %v483 = vsub.f32 %v482, %v480
        %v484 = vadd.f32 %v483, 1e-09
        %v485 = vrcp.pop %v484
        %v486 = vmul.f32 %v480, %v485
        %vm487 = vcmp.gt.f32.partialorder %v486, %v451
        %v488 = vsel %vm487, %v486, %v451
        %v489 = vsel %vm487, %v454, %v422
        %v490 = vsel %vm487, %v457, %v424
        %v491 = vsel %vm487, %v460, %v426
        %v492 = vsel %vm487, %v463, %v428
        %v493 = vsel %vm487, %v237, %v231
        %s494 = scalar_lea.vmem %s192, %s452 [#allocation5]
        %v495 = vld [vmem:[%s494] sm:$0xff]
        %v496 = vsel %vm487, %v495, %v403
        %s497 = scalar_lea.vmem %s192, %s455 [#allocation5]
        %v498 = vld [vmem:[%s497] sm:$0xff]
        %v499 = vsel %vm487, %v498, %v406
        %s500 = scalar_lea.vmem %s192, %s458 [#allocation5]
        %v501 = vld [vmem:[%s500] sm:$0xff]
        %v502 = vsel %vm487, %v501, %v409
        %s503 = scalar_lea.vmem %s192, %s461 [#allocation5]
        %v504 = vld [vmem:[%s503] sm:$0xff]
        %v505 = vsel %vm487, %v504, %v412
        %v506 = vsub.f32 %v489, %v496
        %v507 = vmul.f32 %v506, %v506
        %v508 = vsub.f32 %v490, %v499
        %v509 = vmul.f32 %v508, %v508
        %v510 = vadd.f32 %v507, %v509
        %v511 = vrsqrt.pop %v491
        %v512 = vmul.f32 %v491, %v511
        %vm513 = vcmp.eq.f32.partialorder %v491, inf
        %v514 = vsel %vm513, %v491, %v512
        %vm515 = vcmp.eq.f32.partialorder %v491, 0.0
        %v516 = vand.u32 %v491, 2147483648
        %v517 = vsel %vm515, %v516, %v514
        %v518 = vrsqrt.pop %v502
        %v519 = vmul.f32 %v502, %v518
        %vm520 = vcmp.eq.f32.partialorder %v502, inf
        %v521 = vsel %vm520, %v502, %v519
        %vm522 = vcmp.eq.f32.partialorder %v502, 0.0
        %v523 = vand.u32 %v502, 2147483648
        %v524 = vsel %vm522, %v523, %v521
        %v525 = vsub.f32 %v517, %v524
        %v526 = vmul.f32 %v525, %v525
        %v527 = vrsqrt.pop %v492
        %v528 = vmul.f32 %v492, %v527
        %vm529 = vcmp.eq.f32.partialorder %v492, inf
        %v530 = vsel %vm529, %v492, %v528
        %vm531 = vcmp.eq.f32.partialorder %v492, 0.0
        %v532 = vand.u32 %v492, 2147483648
        %v533 = vsel %vm531, %v532, %v530
        %v534 = vrsqrt.pop %v505
        %v535 = vmul.f32 %v505, %v534
        %vm536 = vcmp.eq.f32.partialorder %v505, inf
        %v537 = vsel %vm536, %v505, %v535
        %vm538 = vcmp.eq.f32.partialorder %v505, 0.0
        %v539 = vand.u32 %v505, 2147483648
        %v540 = vsel %vm538, %v539, %v537
        %v541 = vsub.f32 %v533, %v540
        %v542 = vmul.f32 %v541, %v541
        %v543 = vadd.f32 %v526, %v542
        %v544 = vsub.f32 %v493, %v488
        %v545 = vmul.f32 %v544, %v544
        %v546 = vadd.f32 %v510, %v543
        %v547 = vmul.f32 %v546, 5.0
        %v548 = vadd.f32 %v547, %v545
        %v549 = vadd.f32 %v548, %v402
        %v550 = vsel %vm228, %v549, 0.0
        %v551 = vmul.f32 %v242, 0.5
        %v552 = vsel %vm229, %v551, 0.0
        %v553 = vadd.f32 %v550, %v552
        %v554 = vadd.f32 %v553, 0.0
        %v555 = vld [vmem:[%s217] sm:$0xff]
        %v556 = vadd.f32 %v555, %v554
        %557 = vst [vmem:[%s217] sm:$0xff] %v556
        %s558 = sand.u32 %s98, 1
        %s559 = scalar_lea.sflag [#allocation4], %s558
        %s560 = sand.u32 %s98, 1
        %s561 = smul.addr %s560, 8
        %s562 = scalar_lea.vmem [#allocation7], %s561
        // Predicated region
        $region41: #{tpu_custom_call.1} parent=27 // pred_check
          %p563 = pneg %p108
        $region42: #{tpu_custom_call.1} parent=27 // pred_check_branch
          %565 = sbr.rel (%p563) target = $region44
        $region43: #{tpu_custom_call.1} parent=27 // pred_region
          %s567 = ssub.s32 128, 128
          %568 = vsyncadd %s559, %s567
          %s569 = smul.addr %s26, 128
          %s570 = scalar_lea.hbm %s2, %s569
          %s572 = sshll.u32 %s562, 4
          %s573 = int_to_ptr.vmem [resolvable:$true] %s572
          %575 = dma.vmem_to_hbm [thread:$0]  %s573, 128, %s570, %s559
        $region44: #{tpu_custom_call.1} parent=27 // pred_fallthru
          _
      $region28: #{tpu_custom_call.1} parent=5 // pred_fallthru
        _
      %p576 = scmp.le.s32.totalorder 2, %s17
      // Predicated region
      $region45: #{tpu_custom_call.1} parent=5 // pred_check
        %p577 = pneg %p576
      $region46: #{tpu_custom_call.1} parent=5 // pred_check_branch
        %579 = sbr.rel (%p577) target = $region48
      $region47: #{tpu_custom_call.1} parent=5 // pred_region
        %s580 = ssub.s32 %s17, 2
        // Predicated region
        $region49: #{tpu_custom_call.1} parent=47 // pred_check
          %p581 = pneg %p114
        $region50: #{tpu_custom_call.1} parent=47 // pred_check_branch
          %583 = sbr.rel (%p581) target = $region52
        $region51: #{tpu_custom_call.1} parent=47 // pred_region
          %s584 = sand.u32 %s99, 1
          %s585 = scalar_lea.sflag [#allocation4], %s584
          %s586 = sand.u32 %s99, 1
          %s587 = smul.addr %s586, 8
          %s588 = scalar_lea.vmem [#allocation7], %s587
          %589 = dma.done %s585, 128
        $region52: #{tpu_custom_call.1} parent=47 // pred_fallthru
          _
      $region48: #{tpu_custom_call.1} parent=5 // pred_fallthru
        _
    $region6: #{tpu_custom_call.1} parent=1 // loop_footer
      %s21 = sadd.s32 1, %s17
    $region7: #{tpu_custom_call.1} parent=1 // loop_footer_branch
      %16 = sbr.rel target = $region3
    $region8: #{tpu_custom_call.1} parent=1 // loop_exit
      _
    %590 = vsyncpa [#allocation3], 1
    %s591 = scalar_lea.sflag [#allocation3], 1
    %592 = vsyncpa %s591, 1
    %593 = vsyncpa [#allocation6], 1
    %s594 = scalar_lea.sflag [#allocation6], 1
    %595 = vsyncpa %s594, 1
    %596 = vsyncpa [#allocation4], 1
    %s597 = scalar_lea.sflag [#allocation4], 1
    %598 = vsyncpa %s597, 1

</llo_original>
